<compile_context>
chip_gen: v6e
topology: v6e:2x2x1
jax: 0.10.0
libtpu: 0.0.40
codegen_flags: <defaults>
</compile_context>

<pallas_src>
import functools

import jax
import jax.numpy as jnp
from jax.experimental import pallas as pl
from jax.experimental.pallas import tpu as pltpu


def _round_up(x, m):
    return ((x + m - 1) // m) * m


# ----------------------------------------------------------------------------
# Kernels
# ----------------------------------------------------------------------------
def _residual_ff_kernel(x_ref, w1_ref, b1_ref, w2_ref, b2_ref, o_ref):
    # fn(x) = gelu(x @ W1 + b1) @ W2 + b2 ; output = fn(x) + x
    x = x_ref[...]
    h = jnp.dot(x, w1_ref[...], preferred_element_type=jnp.float32)
    h = jax.nn.gelu(h + b1_ref[...])                    # tanh-approx -> EUP
    y = jnp.dot(h.astype(w2_ref.dtype), w2_ref[...],
                preferred_element_type=jnp.float32)
    y = y + b2_ref[...]
    o_ref[...] = (y + x.astype(jnp.float32)).astype(o_ref.dtype)


def _residual_ff_kernel_htiled(x_ref, w1_ref, b1_ref, w2_ref, b2_ref, o_ref,
                               acc_ref):
    # Same computation with the hidden dim H tiled over grid axis 1; the
    # second matmul is accumulated in an f32 VMEM scratch (init/finalize).
    hk = pl.program_id(1)

    @pl.when(hk == 0)
    def _():
        acc_ref[...] = jnp.zeros_like(acc_ref)

    x = x_ref[...]
    h = jnp.dot(x, w1_ref[...], preferred_element_type=jnp.float32)
    h = jax.nn.gelu(h + b1_ref[...])
    acc_ref[...] += jnp.dot(h.astype(w2_ref.dtype), w2_ref[...],
                            preferred_element_type=jnp.float32)

    @pl.when(hk == pl.num_programs(1) - 1)
    def _():
        o_ref[...] = (acc_ref[...] + b2_ref[...]
                      + x.astype(jnp.float32)).astype(o_ref.dtype)


# ----------------------------------------------------------------------------
# Feature probe: single-buffered (Buffered(1)) resident weights
# ----------------------------------------------------------------------------
def _probe_copy_kernel(x_ref, o_ref):
    o_ref[...] = x_ref[...]


@functools.lru_cache(maxsize=None)
def _single_buffer_supported():
    """True if this JAX build accepts pipeline_mode=pl.Buffered(1) on TPU."""
    try:
        probe = pl.pallas_call(
            _probe_copy_kernel,
            out_shape=jax.ShapeDtypeStruct((8, 128), jnp.float32),
            grid_spec=pltpu.PrefetchScalarGridSpec(
                num_scalar_prefetch=0,
                grid=(1,),
                in_specs=[pl.BlockSpec((8, 128), lambda i: (0, 0),
                                       pipeline_mode=pl.Buffered(1))],
                out_specs=pl.BlockSpec((8, 128), lambda i: (0, 0)),
            ),
        )(jnp.zeros((8, 128), jnp.float32))
        jax.block_until_ready(probe)
        return True
    except Exception:  # fall back to default double buffering on old builds
        return False


# ----------------------------------------------------------------------------
# Wrapper
# ----------------------------------------------------------------------------
def residual_feedforward(x, w1, b1, w2, b2, *, tm=256,
                         compute_dtype=jnp.bfloat16,
                         weight_vmem_budget_bytes=24 << 20):
    """Pallas Residual(FeedForward): gelu(x @ W1 + b1) @ W2 + b2 + x.

    x : [B, N, D]   w1: [D, H]   b1: [H]   w2: [H, D]   b2: [D]
    """
    B, N, D = x.shape
    H = w1.shape[1]
    M = B * N
    out_dtype = x.dtype
    w_itemsize = jnp.dtype(compute_dtype).itemsize

    # Lane/sublane-friendly padding: D, H -> multiples of 128 (lane dim);
    # row tile -> multiple of 8; M padded to the tile (padded rows sliced off).
    Dp = _round_up(D, 128)
    Hp = _round_up(H, 128)
    tm_eff = max(8, _round_up(min(tm, M), 8))
    Mp = _round_up(M, tm_eff)
    n_row_tiles = Mp // tm_eff      # at realistic M this is >= 4 even steps,
                                    # so v7x's 2 TCs both get work ("parallel")

    x2 = jnp.pad(x.reshape(M, D), ((0, Mp - M), (0, Dp - D))).astype(compute_dtype)
    w1p = jnp.pad(w1, ((0, Dp - D), (0, Hp - H))).astype(compute_dtype)
    w2p = jnp.pad(w2, ((0, Hp - H), (0, Dp - D))).astype(compute_dtype)
    b1p = jnp.pad(b1, (0, Hp - H)).reshape(1, Hp).astype(jnp.float32)
    b2p = jnp.pad(b2, (0, Dp - D)).reshape(1, Dp).astype(jnp.float32)

    single_buf = _single_buffer_supported()
    weight_buf_count = 1 if single_buf else 2
    resident_weight_bytes = weight_buf_count * (
        2 * Dp * Hp * w_itemsize + (Hp + Dp) * 4)
    weight_spec_kwargs = (
        dict(pipeline_mode=pl.Buffered(1)) if single_buf else {})

    io_bytes = 2 * tm_eff * Dp * (w_itemsize + jnp.dtype(out_dtype).itemsize)
    interm_bytes = tm_eff * Hp * 4 + 2 * tm_eff * Dp * 4

    if resident_weight_bytes <= weight_vmem_budget_bytes:
        # ---- single-shot path: both weights fully resident in VMEM ----
        vmem_limit = int(min(resident_weight_bytes + io_bytes + interm_bytes
                             + (8 << 20), 48 << 20))
        out = pl.pallas_call(
            _residual_ff_kernel,
            out_shape=jax.ShapeDtypeStruct((Mp, Dp), out_dtype),
            grid_spec=pltpu.PrefetchScalarGridSpec(
                num_scalar_prefetch=0,
                grid=(n_row_tiles,),
                in_specs=[
                    pl.BlockSpec((tm_eff, Dp), lambda i: (i, 0)),       # x rows
                    pl.BlockSpec((Dp, Hp), lambda i: (0, 0), **weight_spec_kwargs),
                    pl.BlockSpec((1, Hp), lambda i: (0, 0), **weight_spec_kwargs),
                    pl.BlockSpec((Hp, Dp), lambda i: (0, 0), **weight_spec_kwargs),
                    pl.BlockSpec((1, Dp), lambda i: (0, 0), **weight_spec_kwargs),
                ],
                out_specs=pl.BlockSpec((tm_eff, Dp), lambda i: (i, 0)),
            ),
            compiler_params=pltpu.CompilerParams(
                dimension_semantics=("parallel",),
                vmem_limit_bytes=vmem_limit),
        )(x2, w1p, b1p, w2p, b2p)
    else:
        # ---- H-tiled accumulator path (large H / v7x 64 MiB VMEM) ----
        per_h_bytes = 2 * Dp * w_itemsize + 4
        th = max(128, (weight_vmem_budget_bytes // (4 * per_h_bytes)) // 128 * 128)
        th = min(th, Hp)
        while Hp % th:
            th -= 128
        vmem_limit = int(min(4 * th * per_h_bytes + 2 * Dp * 4
                             + tm_eff * Dp * 4 + io_bytes + interm_bytes
                             + (8 << 20), 48 << 20))
        out = pl.pallas_call(
            _residual_ff_kernel_htiled,
            out_shape=jax.ShapeDtypeStruct((Mp, Dp), out_dtype),
            grid_spec=pltpu.PrefetchScalarGridSpec(
                num_scalar_prefetch=0,
                grid=(n_row_tiles, Hp // th),
                in_specs=[
                    pl.BlockSpec((tm_eff, Dp), lambda i, k: (i, 0)),   # x rows
                    pl.BlockSpec((Dp, th), lambda i, k: (0, k)),       # W1 slice
                    pl.BlockSpec((1, th), lambda i, k: (0, k)),        # b1 slice
                    pl.BlockSpec((th, Dp), lambda i, k: (k, 0)),       # W2 slice
                    pl.BlockSpec((1, Dp), lambda i, k: (0, 0)),        # b2
                ],
                out_specs=pl.BlockSpec((tm_eff, Dp), lambda i, k: (i, 0)),
                scratch_shapes=[pltpu.VMEM((tm_eff, Dp), jnp.float32)],
            ),
            compiler_params=pltpu.CompilerParams(
                dimension_semantics=("parallel", "arbitrary"),
                vmem_limit_bytes=vmem_limit),
        )(x2, w1p, b1p, w2p, b2p)

    return out[:M, :D].reshape(B, N, D)


class Residual:
    """JAX mirror of the PyTorch Residual(fn) wrapper: forward(x) = fn(x) + x.

    `fn` is bound to the fused Pallas feedforward above; the residual add
    itself is fused inside the kernel.
    """

    def __init__(self, fn):
        self.fn = fn

    def __call__(self, x, **kwargs):
        return self.fn(x, **kwargs)  # "+ x" already fused in the kernel


def _reference(x, w1, b1, w2, b2):
    # Pure-JAX reference of fn(x) + x with fn = Linear-GELU-Linear.
    h = jax.nn.gelu(jnp.einsum("bnd,dh->bnh", x, w1) + b1)
    y = jnp.einsum("bnh,hd->bnd", h, w2) + b2
    return y + x


if __name__ == "__main__":
    B, N, D, H = 2, 8, 32, 256

    key = jax.random.PRNGKey(0)
    kx, k1, k2, k3, k4 = jax.random.split(key, 5)

    x = jax.random.normal(kx, (B, N, D), dtype=jnp.float32)
    w1 = jax.random.normal(k1, (D, H), dtype=jnp.float32) * 0.05
    b1 = jax.random.normal(k2, (H,), dtype=jnp.float32) * 0.01
    w2 = jax.random.normal(k3, (H, D), dtype=jnp.float32) * 0.05
    b2 = jax.random.normal(k4, (D,), dtype=jnp.float32) * 0.01

    ref = _reference(x, w1, b1, w2, b2)

    # 1) default fast path: bf16 operands, f32 accumulation (loose tolerance).
    residual = Residual(functools.partial(residual_feedforward,
                                          w1=w1, b1=b1, w2=w2, b2=b2))
    out_bf16 = jax.block_until_ready(residual(x))
    assert out_bf16.shape == ref.shape and out_bf16.dtype == ref.dtype
    assert jnp.allclose(out_bf16, ref, atol=3e-2, rtol=3e-2), "bf16 path mismatch"

    # 2) f32 single-shot path (tight tolerance).
    out_f32 = jax.block_until_ready(
        residual_feedforward(x, w1, b1, w2, b2, compute_dtype=jnp.float32))
    assert jnp.allclose(out_f32, ref, atol=1e-4, rtol=1e-4), "f32 path mismatch"

    # 3) H-tiled accumulator path, forced via a tiny weight-VMEM budget
    #    (the path used on v7x when resident weights would not fit).
    out_ht = jax.block_until_ready(
        residual_feedforward(x, w1, b1, w2, b2, compute_dtype=jnp.float32,
                             weight_vmem_budget_bytes=1 << 10))
    assert jnp.allclose(out_ht, ref, atol=1e-4, rtol=1e-4), "H-tiled path mismatch"

    # 4) awkward row count (M = 15): exercises pad-instead-of-assert handling.
    x_odd = jax.random.normal(kx, (3, 5, D), dtype=jnp.float32)
    out_odd = jax.block_until_ready(
        residual_feedforward(x_odd, w1, b1, w2, b2, compute_dtype=jnp.float32))
    assert jnp.allclose(out_odd, _reference(x_odd, w1, b1, w2, b2),
                        atol=1e-4, rtol=1e-4), "padded-rows path mismatch"

    print("KERNEL_OK")
</pallas_src>

<mosaic_0001>
module attributes {stable_mosaic.version = 11 : i64} {
  func.func @_probe_copy_kernel(%arg0: i32, %arg1: memref<8x128xf32, #tpu.memory_space<vmem>>, %arg2: memref<8x128xf32, #tpu.memory_space<vmem>>) attributes {dimension_semantics = [#tpu.dimension_semantics<arbitrary>], iteration_bounds = array<i64: 1>, scalar_prefetch = 0 : i64, scratch_operands = 0 : i64, tpu.core_type = #tpu.core_type<tc>, window_params = [{pipeline_mode = #tpu.pipeline_mode<synchronous>, transform_indices = @transform_0, window_bounds = array<i64: 8, 128>}, {pipeline_mode = #tpu.pipeline_mode<synchronous>, transform_indices = @transform_1, window_bounds = array<i64: 8, 128>}]} {
    %c0 = arith.constant 0 : index
    %c0_0 = arith.constant 0 : index
    %0 = vector.load %arg1[%c0, %c0_0] : memref<8x128xf32, #tpu.memory_space<vmem>>, vector<8x128xf32>
    %c0_1 = arith.constant 0 : index
    %c0_2 = arith.constant 0 : index
    %1 = vector.load %arg2[%c0_1, %c0_2] : memref<8x128xf32, #tpu.memory_space<vmem>>, vector<8x128xf32>
    tpu.vector_store %arg2[%c0_1, %c0_2], %0 {strides = array<i32>} : memref<8x128xf32, #tpu.memory_space<vmem>>, vector<8x128xf32>,
    return
  }
  func.func @transform_0(%arg0: i32) -> (i32, i32) {
    %c0_i32 = arith.constant 0 : i32
    %c0_i32_0 = arith.constant 0 : i32
    %c0_i32_1 = arith.constant 0 : i32
    return %c0_i32, %c0_i32_0 : i32, i32
  }
  func.func @transform_1(%arg0: i32) -> (i32, i32) {
    %c0_i32 = arith.constant 0 : i32
    %c0_i32_0 = arith.constant 0 : i32
    %c0_i32_1 = arith.constant 0 : i32
    return %c0_i32, %c0_i32_0 : i32, i32
  }
}

module attributes {stable_mosaic.version = 11 : i64} {
  func.func @_residual_ff_kernel(%arg0: i32, %arg1: memref<16x128xbf16, #tpu.memory_space<vmem>>, %arg2: memref<128x256xbf16, #tpu.memory_space<vmem>>, %arg3: memref<1x256xf32, #tpu.memory_space<vmem>>, %arg4: memref<256x128xbf16, #tpu.memory_space<vmem>>, %arg5: memref<1x128xf32, #tpu.memory_space<vmem>>, %arg6: memref<16x128xf32, #tpu.memory_space<vmem>>) attributes {dimension_semantics = [#tpu.dimension_semantics<parallel>], iteration_bounds = array<i64: 1>, scalar_prefetch = 0 : i64, scratch_operands = 0 : i64, tpu.core_type = #tpu.core_type<tc>, window_params = [{transform_indices = @transform_0, window_bounds = array<i64: 16, 128>}, {pipeline_mode = #tpu.pipeline_mode<synchronous>, transform_indices = @transform_1, window_bounds = array<i64: 128, 256>}, {pipeline_mode = #tpu.pipeline_mode<synchronous>, transform_indices = @transform_2, window_bounds = array<i64: 1, 256>}, {pipeline_mode = #tpu.pipeline_mode<synchronous>, transform_indices = @transform_3, window_bounds = array<i64: 256, 128>}, {pipeline_mode = #tpu.pipeline_mode<synchronous>, transform_indices = @transform_4, window_bounds = array<i64: 1, 128>}, {transform_indices = @transform_5, window_bounds = array<i64: 16, 128>}]} {
    %c0 = arith.constant 0 : index
    %c0_0 = arith.constant 0 : index
    %0 = vector.load %arg1[%c0, %c0_0] : memref<16x128xbf16, #tpu.memory_space<vmem>>, vector<16x128xbf16>
    %c0_1 = arith.constant 0 : index
    %c0_2 = arith.constant 0 : index
    %1 = vector.load %arg2[%c0_1, %c0_2] : memref<128x256xbf16, #tpu.memory_space<vmem>>, vector<128x256xbf16>
    %cst = arith.constant dense<0.000000e+00> : vector<16x256xf32>
    %2 = tpu.matmul %0, %1, %cst {dimension_numbers = #tpu.dot_dimension_numbers<[1], [0], [0], [1], [0, 0, 1, 1], [], []>} : vector<16x128xbf16>, vector<128x256xbf16>, vector<16x256xf32> -> vector<16x256xf32>
    %c0_3 = arith.constant 0 : index
    %c0_4 = arith.constant 0 : index
    %3 = vector.load %arg3[%c0_3, %c0_4] : memref<1x256xf32, #tpu.memory_space<vmem>>, vector<1x256xf32>
    %4 = vector.broadcast %3 : vector<1x256xf32> to vector<16x256xf32>
    %5 = arith.addf %2, %4 : vector<16x256xf32>
    %6 = arith.mulf %5, %5 : vector<16x256xf32>
    %7 = arith.mulf %5, %6 : vector<16x256xf32>
    %cst_5 = arith.constant 4.471500e-02 : f32
    %8 = vector.broadcast %cst_5 : f32 to vector<16x256xf32>
    %9 = arith.mulf %8, %7 : vector<16x256xf32>
    %10 = arith.addf %5, %9 : vector<16x256xf32>
    %cst_6 = arith.constant 0.797884583 : f32
    %11 = vector.broadcast %cst_6 : f32 to vector<16x256xf32>
    %12 = arith.mulf %11, %10 : vector<16x256xf32>
    %13 = math.tanh %12 : vector<16x256xf32>
    %cst_7 = arith.constant 1.000000e+00 : f32
    %14 = vector.broadcast %cst_7 : f32 to vector<16x256xf32>
    %15 = arith.addf %14, %13 : vector<16x256xf32>
    %cst_8 = arith.constant 5.000000e-01 : f32
    %16 = vector.broadcast %cst_8 : f32 to vector<16x256xf32>
    %17 = arith.mulf %16, %15 : vector<16x256xf32>
    %18 = arith.mulf %5, %17 : vector<16x256xf32>
    %19 = arith.truncf %18 : vector<16x256xf32> to vector<16x256xbf16>
    %c0_9 = arith.constant 0 : index
    %c0_10 = arith.constant 0 : index
    %20 = vector.load %arg4[%c0_9, %c0_10] : memref<256x128xbf16, #tpu.memory_space<vmem>>, vector<256x128xbf16>
    %cst_11 = arith.constant dense<0.000000e+00> : vector<16x128xf32>
    %21 = tpu.matmul %19, %20, %cst_11 {dimension_numbers = #tpu.dot_dimension_numbers<[1], [0], [0], [1], [0, 0, 1, 1], [], []>} : vector<16x256xbf16>, vector<256x128xbf16>, vector<16x128xf32> -> vector<16x128xf32>
    %c0_12 = arith.constant 0 : index
    %c0_13 = arith.constant 0 : index
    %22 = vector.load %arg5[%c0_12, %c0_13] : memref<1x128xf32, #tpu.memory_space<vmem>>, vector<1x128xf32>
    %23 = vector.broadcast %22 : vector<1x128xf32> to vector<16x128xf32>
    %24 = arith.addf %21, %23 : vector<16x128xf32>
    %25 = arith.extf %0 : vector<16x128xbf16> to vector<16x128xf32>
    %26 = arith.addf %24, %25 : vector<16x128xf32>
    %c0_14 = arith.constant 0 : index
    %c0_15 = arith.constant 0 : index
    %27 = vector.load %arg6[%c0_14, %c0_15] : memref<16x128xf32, #tpu.memory_space<vmem>>, vector<16x128xf32>
    tpu.vector_store %arg6[%c0_14, %c0_15], %26 {strides = array<i32>} : memref<16x128xf32, #tpu.memory_space<vmem>>, vector<16x128xf32>,
    return
  }
  func.func @transform_0(%arg0: i32) -> (i32, i32) {
    %c0_i32 = arith.constant 0 : i32
    %c0_i32_0 = arith.constant 0 : i32
    return %arg0, %c0_i32 : i32, i32
  }
  func.func @transform_1(%arg0: i32) -> (i32, i32) {
    %c0_i32 = arith.constant 0 : i32
    %c0_i32_0 = arith.constant 0 : i32
    %c0_i32_1 = arith.constant 0 : i32
    return %c0_i32, %c0_i32_0 : i32, i32
  }
  func.func @transform_2(%arg0: i32) -> (i32, i32) {
    %c0_i32 = arith.constant 0 : i32
    %c0_i32_0 = arith.constant 0 : i32
    %c0_i32_1 = arith.constant 0 : i32
    return %c0_i32, %c0_i32_0 : i32, i32
  }
  func.func @transform_3(%arg0: i32) -> (i32, i32) {
    %c0_i32 = arith.constant 0 : i32
    %c0_i32_0 = arith.constant 0 : i32
    %c0_i32_1 = arith.constant 0 : i32
    return %c0_i32, %c0_i32_0 : i32, i32
  }
  func.func @transform_4(%arg0: i32) -> (i32, i32) {
    %c0_i32 = arith.constant 0 : i32
    %c0_i32_0 = arith.constant 0 : i32
    %c0_i32_1 = arith.constant 0 : i32
    return %c0_i32, %c0_i32_0 : i32, i32
  }
  func.func @transform_5(%arg0: i32) -> (i32, i32) {
    %c0_i32 = arith.constant 0 : i32
    %c0_i32_0 = arith.constant 0 : i32
    return %arg0, %c0_i32 : i32, i32
  }
}

</mosaic_0001>

<llo_original>
// kernel: tpu_custom_call.1
$region0: #{tpu_custom_call.1}
  #allocation0 [shape = 'u32[]', space=smem, size = 0x4, offset = 0x4, fixed_abs, tag = 'smem constant byte address 0x4 - core index']
  #allocation1 [shape = 'u32[144,128]{1,0:T(1,128)}', space=vmem, size = 0x12000, scoped, tag = 'internal scratch']
  %s0 = inlined_call_operand.hbm [shape: f32[8,128], index: 0, kind: input, shape index: {}]
  %s1 = inlined_call_operand.hbm [shape: f32[8,128], index: 1, kind: output, shape index: {}]
  %s2 = sld [smem:[#allocation0]]
  $region18: #{tpu_custom_call.1} parent=0
    _
  %s4 = ssub.s32 1, %s2
  %s5 = scalar_select 0, %s4, %s2
  $region1: #{tpu_custom_call.1} parent=0
    #allocation2 [shape = 'u8[4096]{0}', space=vmem, size = 0x1000, scoped, tag = 'input window, operand 0, single buffered']
    #allocation3 [shape = 's32[1]{0}', space=sflag, size = 0x4, scoped, tag = 'scoped memory for tpu_custom_call.1']
    #allocation4 [shape = 's32[1]{0}', space=sflag, size = 0x4, scoped, tag = 'scoped memory for tpu_custom_call.1']
    #allocation5 [shape = 'u8[4096]{0}', space=vmem, size = 0x1000, scoped, tag = 'output window, operand 0, single buffered']
    %6 = vsyncpa [#allocation3], 0
    %7 = vsyncpa [#allocation4], 0
    // Predicated region
    $region2: #{tpu_custom_call.1} parent=1 // pred_check
      _
    $region3: #{tpu_custom_call.1} parent=1 // pred_check_branch
      %9 = sbr.rel (0) target = $region5
    $region4: #{tpu_custom_call.1} parent=1 // pred_region
      %s11 = ssub.s32 128, 128
      %12 = vsyncadd [#allocation3], %s11
      %s14 = sshll.u32 [#allocation2], 4
      %s15 = int_to_ptr.vmem [resolvable:$true] %s14
      %17 = dma.hbm_to_vmem [thread:$0]  %s0, 128, %s15, [#allocation3]
    $region5: #{tpu_custom_call.1} parent=1 // pred_fallthru
      _
    // Predicated region
    $region6: #{tpu_custom_call.1} parent=1 // pred_check
      _
    $region7: #{tpu_custom_call.1} parent=1 // pred_check_branch
      %19 = sbr.rel (0) target = $region9
    $region8: #{tpu_custom_call.1} parent=1 // pred_region
      %20 = dma.done [#allocation3], 128
    $region9: #{tpu_custom_call.1} parent=1 // pred_fallthru
      _
    %v21 = vld [vmem:[#allocation2] sm:$0xff]
    %22 = vst [vmem:[#allocation5] sm:$0xff] %v21
    // Predicated region
    $region10: #{tpu_custom_call.1} parent=1 // pred_check
      _
    $region11: #{tpu_custom_call.1} parent=1 // pred_check_branch
      %24 = sbr.rel (0) target = $region13
    $region12: #{tpu_custom_call.1} parent=1 // pred_region
      %s26 = ssub.s32 128, 128
      %27 = vsyncadd [#allocation4], %s26
      %s29 = sshll.u32 [#allocation5], 4
      %s30 = int_to_ptr.vmem [resolvable:$true] %s29
      %32 = dma.vmem_to_hbm [thread:$0]  %s30, 128, %s1, [#allocation4]
    $region13: #{tpu_custom_call.1} parent=1 // pred_fallthru
      _
    // Predicated region
    $region14: #{tpu_custom_call.1} parent=1 // pred_check
      _
    $region15: #{tpu_custom_call.1} parent=1 // pred_check_branch
      %34 = sbr.rel (0) target = $region17
    $region16: #{tpu_custom_call.1} parent=1 // pred_region
      %35 = dma.done [#allocation4], 128
    $region17: #{tpu_custom_call.1} parent=1 // pred_fallthru
      _
    %36 = vsyncpa [#allocation3], 1
    %37 = vsyncpa [#allocation4], 1

// kernel: tpu_custom_call.1
$region0: #{tpu_custom_call.1}
  #allocation0 [shape = 'u32[]', space=smem, size = 0x4, offset = 0x4, fixed_abs, tag = 'smem constant byte address 0x4 - core index']
  #allocation1 [shape = 'u32[144,128]{1,0:T(1,128)}', space=vmem, size = 0x12000, scoped, tag = 'internal scratch']
  %s0 = inlined_call_operand.hbm [shape: bf16[16,128], index: 0, kind: input, shape index: {}]
  %s1 = inlined_call_operand.hbm [shape: bf16[128,256], index: 1, kind: input, shape index: {}]
  %s2 = inlined_call_operand.vmem [shape: f32[1,256], index: 2, kind: input, shape index: {}]
  %s3 = inlined_call_operand.hbm [shape: bf16[256,128], index: 3, kind: input, shape index: {}]
  %s4 = inlined_call_operand.vmem [shape: f32[1,128], index: 4, kind: input, shape index: {}]
  %s5 = inlined_call_operand.hbm [shape: f32[16,128], index: 5, kind: output, shape index: {}]
  %s6 = sld [smem:[#allocation0]]
  $region42: #{tpu_custom_call.1} parent=0
    _
  %s8 = ssub.s32 1, %s6
  %s9 = scalar_select 0, %s8, %s6
  $region1: #{tpu_custom_call.1} parent=0
    #allocation2 [shape = 'u8[4096]{0}', space=vmem, size = 0x1000, scoped, tag = 'input window, operand 0, single buffered']
    #allocation3 [shape = 's32[1]{0}', space=sflag, size = 0x4, scoped, tag = 'scoped memory for tpu_custom_call.1']
    #allocation4 [shape = 's32[1]{0}', space=sflag, size = 0x4, scoped, tag = 'scoped memory for tpu_custom_call.1']
    #allocation5 [shape = 'u8[65536]{0}', space=vmem, size = 0x10000, scoped, tag = 'input window, operand 1, single buffered']
    #allocation6 [shape = 's32[1]{0}', space=sflag, size = 0x4, scoped, tag = 'scoped memory for tpu_custom_call.1']
    #allocation7 [shape = 'u8[65536]{0}', space=vmem, size = 0x10000, scoped, tag = 'input window, operand 3, single buffered']
    #allocation8 [shape = 'u8[8192]{0}', space=vmem, size = 0x2000, scoped, tag = 'output window, operand 0, single buffered']
    %10 = vsyncpa [#allocation3], 0
    %11 = vsyncpa [#allocation6], 0
    %12 = vsyncpa [#allocation4], 0
    // Predicated region
    $region2: #{tpu_custom_call.1} parent=1 // pred_check
      _
    $region3: #{tpu_custom_call.1} parent=1 // pred_check_branch
      %14 = sbr.rel (0) target = $region5
    $region4: #{tpu_custom_call.1} parent=1 // pred_region
      %s16 = ssub.s32 128, 128
      %17 = vsyncadd [#allocation3], %s16
      %s18 = sshll.u32 [#allocation2], 4
      %s19 = int_to_ptr.vmem [resolvable:$true] %s18
      %24 = dma.hbm_to_vmem [thread:$0]  %s0, 128, %s19, [#allocation3], 64, 64, 4
    $region5: #{tpu_custom_call.1} parent=1 // pred_fallthru
      _
    // Predicated region
    $region6: #{tpu_custom_call.1} parent=1 // pred_check
      _
    $region7: #{tpu_custom_call.1} parent=1 // pred_check_branch
      %26 = sbr.rel (0) target = $region9
    $region8: #{tpu_custom_call.1} parent=1 // pred_region
      %s28 = ssub.s32 2048, 2048
      %29 = vsyncadd [#allocation6], %s28
      %s30 = sshll.u32 [#allocation5], 4
      %s31 = int_to_ptr.vmem [resolvable:$true] %s30
      %36 = dma.hbm_to_vmem [thread:$0]  %s1, 2048, %s31, [#allocation6], 128, 128, 8
    $region9: #{tpu_custom_call.1} parent=1 // pred_fallthru
      _
    // Predicated region
    $region10: #{tpu_custom_call.1} parent=1 // pred_check
      _
    $region11: #{tpu_custom_call.1} parent=1 // pred_check_branch
      %38 = sbr.rel (0) target = $region13
    $region12: #{tpu_custom_call.1} parent=1 // pred_region
      _
    $region13: #{tpu_custom_call.1} parent=1 // pred_fallthru
      _
    // Predicated region
    $region14: #{tpu_custom_call.1} parent=1 // pred_check
      _
    $region15: #{tpu_custom_call.1} parent=1 // pred_check_branch
      %40 = sbr.rel (0) target = $region17
    $region16: #{tpu_custom_call.1} parent=1 // pred_region
      %s42 = ssub.s32 2048, 2048
      %43 = vsyncadd [#allocation6], %s42
      %s44 = sshll.u32 [#allocation7], 4
      %s45 = int_to_ptr.vmem [resolvable:$true] %s44
      %50 = dma.hbm_to_vmem [thread:$0]  %s3, 2048, %s45, [#allocation6], 64, 64, 4
    $region17: #{tpu_custom_call.1} parent=1 // pred_fallthru
      _
    // Predicated region
    $region18: #{tpu_custom_call.1} parent=1 // pred_check
      _
    $region19: #{tpu_custom_call.1} parent=1 // pred_check_branch
      %52 = sbr.rel (0) target = $region21
    $region20: #{tpu_custom_call.1} parent=1 // pred_region
      _
    $region21: #{tpu_custom_call.1} parent=1 // pred_fallthru
      _
    // Predicated region
    $region22: #{tpu_custom_call.1} parent=1 // pred_check
      _
    $region23: #{tpu_custom_call.1} parent=1 // pred_check_branch
      %54 = sbr.rel (0) target = $region25
    $region24: #{tpu_custom_call.1} parent=1 // pred_region
      %55 = dma.done [#allocation3], 128
    $region25: #{tpu_custom_call.1} parent=1 // pred_fallthru
      _
    // Predicated region
    $region26: #{tpu_custom_call.1} parent=1 // pred_check
      _
    $region27: #{tpu_custom_call.1} parent=1 // pred_check_branch
      %57 = sbr.rel (0) target = $region29
    $region28: #{tpu_custom_call.1} parent=1 // pred_region
      %58 = dma.done [#allocation6], 2048
    $region29: #{tpu_custom_call.1} parent=1 // pred_fallthru
      _
    // Predicated region
    $region30: #{tpu_custom_call.1} parent=1 // pred_check
      _
    $region31: #{tpu_custom_call.1} parent=1 // pred_check_branch
      %60 = sbr.rel (0) target = $region33
    $region32: #{tpu_custom_call.1} parent=1 // pred_region
      %61 = dma.done [#allocation6], 2048
    $region33: #{tpu_custom_call.1} parent=1 // pred_fallthru
      _
    %v63 = vld [vmem:[#allocation2] sm:$0xf]
    %v64 = vld [vmem:[#allocation2 + $0x4] sm:$0xf]
    %v65 = vld [vmem:[#allocation5] sm:$0xff]
    %v66 = vld [vmem:[#allocation5 + $0x8] sm:$0xff]
    %v67 = vld [vmem:[#allocation5 + $0x10] sm:$0xff]
    %v68 = vld [vmem:[#allocation5 + $0x18] sm:$0xff]
    %v69 = vld [vmem:[#allocation5 + $0x20] sm:$0xff]
    %v70 = vld [vmem:[#allocation5 + $0x28] sm:$0xff]
    %v71 = vld [vmem:[#allocation5 + $0x30] sm:$0xff]
    %v72 = vld [vmem:[#allocation5 + $0x38] sm:$0xff]
    %v73 = vld [vmem:[#allocation5 + $0x40] sm:$0xff]
    %v74 = vld [vmem:[#allocation5 + $0x48] sm:$0xff]
    %v75 = vld [vmem:[#allocation5 + $0x50] sm:$0xff]
    %v76 = vld [vmem:[#allocation5 + $0x58] sm:$0xff]
    %v77 = vld [vmem:[#allocation5 + $0x60] sm:$0xff]
    %v78 = vld [vmem:[#allocation5 + $0x68] sm:$0xff]
    %v79 = vld [vmem:[#allocation5 + $0x70] sm:$0xff]
    %v80 = vld [vmem:[#allocation5 + $0x78] sm:$0xff]
    %v81 = vld [vmem:[%s2] sm:$0x3]
    %v83 = vlaneseq
    %v84 = vshrl.u32 %v83, 7
    %v85 = vsub.s32 0, %v84
    %v86 = vrot.slane %v81, %v85
    %v87 = vlaneseq
    %v88 = vshrl.u32 %v87, 7
    %v89 = vsub.s32 1, %v88
    %v90 = vrot.slane %v81, %v89
    %v95 = vunpack.c.l.b16 %v63
    %v96 = vunpack.c.l.b16 %v64
    %v97 = vpack.c.b16 %v96, %v95
    %v115 = vunpack.c.l.b16 %v65
    %v116 = vunpack.c.h.b16 %v65
    %v117 = vunpack.c.l.b16 %v66
    %v118 = vunpack.c.h.b16 %v66
    %v119 = vunpack.c.l.b16 %v67
    %v120 = vunpack.c.h.b16 %v67
    %v121 = vunpack.c.l.b16 %v68
    %v122 = vunpack.c.h.b16 %v68
    %v123 = vunpack.c.l.b16 %v69
    %v124 = vunpack.c.h.b16 %v69
    %v125 = vunpack.c.l.b16 %v70
    %v126 = vunpack.c.h.b16 %v70
    %v127 = vunpack.c.l.b16 %v71
    %v128 = vunpack.c.h.b16 %v71
    %v129 = vunpack.c.l.b16 %v72
    %v130 = vunpack.c.h.b16 %v72
    %v131 = vunpack.c.l.b16 %v73
    %v132 = vunpack.c.h.b16 %v73
    %v133 = vunpack.c.l.b16 %v74
    %v134 = vunpack.c.h.b16 %v74
    %v135 = vunpack.c.l.b16 %v75
    %v136 = vunpack.c.h.b16 %v75
    %v137 = vunpack.c.l.b16 %v76
    %v138 = vunpack.c.h.b16 %v76
    %v139 = vunpack.c.l.b16 %v77
    %v140 = vunpack.c.h.b16 %v77
    %v141 = vunpack.c.l.b16 %v78
    %v142 = vunpack.c.h.b16 %v78
    %v143 = vunpack.c.l.b16 %v79
    %v144 = vunpack.c.h.b16 %v79
    %v145 = vunpack.c.l.b16 %v80
    %v146 = vunpack.c.h.b16 %v80
    %v147 = vpack.c.b16 %v117, %v115
    %v148 = vpack.c.b16 %v118, %v116
    %v149 = vpack.c.b16 %v121, %v119
    %v150 = vpack.c.b16 %v122, %v120
    %v151 = vpack.c.b16 %v125, %v123
    %v152 = vpack.c.b16 %v126, %v124
    %v153 = vpack.c.b16 %v129, %v127
    %v154 = vpack.c.b16 %v130, %v128
    %v155 = vpack.c.b16 %v133, %v131
    %v156 = vpack.c.b16 %v134, %v132
    %v157 = vpack.c.b16 %v137, %v135
    %v158 = vpack.c.b16 %v138, %v136
    %v159 = vpack.c.b16 %v141, %v139
    %v160 = vpack.c.b16 %v142, %v140
    %v161 = vpack.c.b16 %v145, %v143
    %v162 = vpack.c.b16 %v146, %v144
    %179 = vmatprep.subr.bf16.mxu0 %v162
    %180 = vmatpush1.bf16.msra.mxu0 %v161
    %181 = vmatprep.subr.bf16.mxu0 %v160
    %182 = vmatpush1.bf16.msra.mxu0 %v159
    %183 = vmatprep.subr.bf16.mxu0 %v158
    %184 = vmatpush1.bf16.msra.mxu0 %v157
    %185 = vmatprep.subr.bf16.mxu0 %v156
    %186 = vmatpush1.bf16.msra.mxu0 %v155
    %187 = vmatprep.subr.bf16.mxu0 %v154
    %188 = vmatpush1.bf16.msra.mxu0 %v153
    %189 = vmatprep.subr.bf16.mxu0 %v152
    %190 = vmatpush1.bf16.msra.mxu0 %v151
    %191 = vmatprep.subr.bf16.mxu0 %v150
    %192 = vmatpush1.bf16.msra.mxu0 %v149
    %193 = vmatprep.subr.bf16.mxu0 %v148
    %194 = vmatpush1.bf16.msra.mxu0 %v147
    %195 = vmatprep.subr.bf16.mxu0 0
    %196 = vmatpush2.bf16.msra.mxu0 0
    %197 = vmatprep.subr.bf16.mxu0 0
    %198 = vmatpush2.bf16.msra.mxu0 0
    %199 = vmatprep.subr.bf16.mxu0 0
    %200 = vmatpush2.bf16.msra.mxu0 0
    %201 = vmatprep.subr.bf16.mxu0 0
    %202 = vmatpush2.bf16.msra.mxu0 0
    %203 = vmatprep.subr.bf16.mxu0 0
    %204 = vmatpush2.bf16.msra.mxu0 0
    %205 = vmatprep.subr.bf16.mxu0 0
    %206 = vmatpush2.bf16.msra.mxu0 0
    %207 = vmatprep.subr.bf16.mxu0 0
    %208 = vmatpush2.bf16.msra.mxu0 0
    %209 = vmatprep.subr.bf16.mxu0 0
    %210 = vmatpush2.bf16.msra.mxu0 0
    %211 = vmatprep.mubr.bf16.mxu0 0
    %212 = vmatmul.mubr.bf16.gmra.mxu0 %v97
    %v213 = vpop.f32.mrf.mxu0
    %v214 = vadd.f32 %v86, %v213
    %v215 = vpop.f32.mrf.mxu0
    %v216 = vadd.f32 %v90, %v215
    %v217 = vpop.f32.mrf.mxu0
    %v218 = vadd.f32 %v86, %v217
    %v219 = vpop.f32.mrf.mxu0
    %v220 = vadd.f32 %v90, %v219
    %221 = vdwg.mxu0
    %v222 = vmul.f32 %v214, %v214
    %v223 = vmul.f32 %v216, %v216
    %v224 = vmul.f32 %v218, %v218
    %v225 = vmul.f32 %v220, %v220
    %v226 = vmul.f32 %v214, %v222
    %v227 = vmul.f32 %v216, %v223
    %v228 = vmul.f32 %v218, %v224
    %v229 = vmul.f32 %v220, %v225
    %v230 = vmul.f32 %v226, 0.044715
    %v231 = vmul.f32 %v227, 0.044715
    %v232 = vmul.f32 %v228, 0.044715
    %v233 = vmul.f32 %v229, 0.044715
    %v234 = vadd.f32 %v214, %v230
    %v235 = vadd.f32 %v216, %v231
    %v236 = vadd.f32 %v218, %v232
    %v237 = vadd.f32 %v220, %v233
    %v238 = vmul.f32 %v234, 0.7978846
    %v239 = vmul.f32 %v235, 0.7978846
    %v240 = vmul.f32 %v236, 0.7978846
    %v241 = vmul.f32 %v237, 0.7978846
    %v242 = vtanh.pop %v238
    %v243 = vtanh.pop %v239
    %v244 = vtanh.pop %v240
    %v245 = vtanh.pop %v241
    %v246 = vadd.f32 %v242, 1.0
    %v247 = vadd.f32 %v243, 1.0
    %v248 = vadd.f32 %v244, 1.0
    %v249 = vadd.f32 %v245, 1.0
    %v250 = vmul.f32 %v246, 0.5
    %v251 = vmul.f32 %v247, 0.5
    %v252 = vmul.f32 %v248, 0.5
    %v253 = vmul.f32 %v249, 0.5
    %v254 = vmul.f32 %v214, %v250
    %v255 = vmul.f32 %v216, %v251
    %v256 = vmul.f32 %v218, %v252
    %v257 = vmul.f32 %v220, %v253
    %v258 = vpack.c.bf16 %v256, %v254
    %v259 = vpack.c.bf16 %v257, %v255
    %v260 = vld [vmem:[#allocation7] sm:$0xf]
    %v261 = vld [vmem:[#allocation7 + $0x4] sm:$0xf]
    %v262 = vld [vmem:[#allocation7 + $0x8] sm:$0xf]
    %v263 = vld [vmem:[#allocation7 + $0xc] sm:$0xf]
    %v264 = vld [vmem:[#allocation7 + $0x10] sm:$0xf]
    %v265 = vld [vmem:[#allocation7 + $0x14] sm:$0xf]
    %v266 = vld [vmem:[#allocation7 + $0x18] sm:$0xf]
    %v267 = vld [vmem:[#allocation7 + $0x1c] sm:$0xf]
    %v268 = vld [vmem:[#allocation7 + $0x20] sm:$0xf]
    %v269 = vld [vmem:[#allocation7 + $0x24] sm:$0xf]
    %v270 = vld [vmem:[#allocation7 + $0x28] sm:$0xf]
    %v271 = vld [vmem:[#allocation7 + $0x2c] sm:$0xf]
    %v272 = vld [vmem:[#allocation7 + $0x30] sm:$0xf]
    %v273 = vld [vmem:[#allocation7 + $0x34] sm:$0xf]
    %v274 = vld [vmem:[#allocation7 + $0x38] sm:$0xf]
    %v275 = vld [vmem:[#allocation7 + $0x3c] sm:$0xf]
    %v276 = vld [vmem:[#allocation7 + $0x40] sm:$0xf]
    %v277 = vld [vmem:[#allocation7 + $0x44] sm:$0xf]
    %v278 = vld [vmem:[#allocation7 + $0x48] sm:$0xf]
    %v279 = vld [vmem:[#allocation7 + $0x4c] sm:$0xf]
    %v280 = vld [vmem:[#allocation7 + $0x50] sm:$0xf]
    %v281 = vld [vmem:[#allocation7 + $0x54] sm:$0xf]
    %v282 = vld [vmem:[#allocation7 + $0x58] sm:$0xf]
    %v283 = vld [vmem:[#allocation7 + $0x5c] sm:$0xf]
    %v284 = vld [vmem:[#allocation7 + $0x60] sm:$0xf]
    %v285 = vld [vmem:[#allocation7 + $0x64] sm:$0xf]
    %v286 = vld [vmem:[#allocation7 + $0x68] sm:$0xf]
    %v287 = vld [vmem:[#allocation7 + $0x6c] sm:$0xf]
    %v288 = vld [vmem:[#allocation7 + $0x70] sm:$0xf]
    %v289 = vld [vmem:[#allocation7 + $0x74] sm:$0xf]
    %v290 = vld [vmem:[#allocation7 + $0x78] sm:$0xf]
    %v291 = vld [vmem:[#allocation7 + $0x7c] sm:$0xf]
    %v292 = vld [vmem:[%s4] sm:$0x1]
    %v294 = vlaneseq
    %v295 = vshrl.u32 %v294, 7
    %v296 = vsub.s32 0, %v295
    %v297 = vrot.slane %v292, %v296
    %v331 = vunpack.c.l.b16 %v260
    %v332 = vunpack.c.l.b16 %v261
    %v333 = vunpack.c.l.b16 %v262
    %v334 = vunpack.c.l.b16 %v263
    %v335 = vunpack.c.l.b16 %v264
    %v336 = vunpack.c.l.b16 %v265
    %v337 = vunpack.c.l.b16 %v266
    %v338 = vunpack.c.l.b16 %v267
    %v339 = vunpack.c.l.b16 %v268
    %v340 = vunpack.c.l.b16 %v269
    %v341 = vunpack.c.l.b16 %v270
    %v342 = vunpack.c.l.b16 %v271
    %v343 = vunpack.c.l.b16 %v272
    %v344 = vunpack.c.l.b16 %v273
    %v345 = vunpack.c.l.b16 %v274
    %v346 = vunpack.c.l.b16 %v275
    %v347 = vunpack.c.l.b16 %v276
    %v348 = vunpack.c.l.b16 %v277
    %v349 = vunpack.c.l.b16 %v278
    %v350 = vunpack.c.l.b16 %v279
    %v351 = vunpack.c.l.b16 %v280
    %v352 = vunpack.c.l.b16 %v281
    %v353 = vunpack.c.l.b16 %v282
    %v354 = vunpack.c.l.b16 %v283
    %v355 = vunpack.c.l.b16 %v284
    %v356 = vunpack.c.l.b16 %v285
    %v357 = vunpack.c.l.b16 %v286
    %v358 = vunpack.c.l.b16 %v287
    %v359 = vunpack.c.l.b16 %v288
    %v360 = vunpack.c.l.b16 %v289
    %v361 = vunpack.c.l.b16 %v290
    %v362 = vunpack.c.l.b16 %v291
    %v363 = vpack.c.b16 %v332, %v331
    %v364 = vpack.c.b16 %v334, %v333
    %v365 = vpack.c.b16 %v336, %v335
    %v366 = vpack.c.b16 %v338, %v337
    %v367 = vpack.c.b16 %v340, %v339
    %v368 = vpack.c.b16 %v342, %v341
    %v369 = vpack.c.b16 %v344, %v343
    %v370 = vpack.c.b16 %v346, %v345
    %v371 = vpack.c.b16 %v348, %v347
    %v372 = vpack.c.b16 %v350, %v349
    %v373 = vpack.c.b16 %v352, %v351
    %v374 = vpack.c.b16 %v354, %v353
    %v375 = vpack.c.b16 %v356, %v355
    %v376 = vpack.c.b16 %v358, %v357
    %v377 = vpack.c.b16 %v360, %v359
    %v378 = vpack.c.b16 %v362, %v361
    %395 = vmatprep.subr.bf16.mxu0 0
    %396 = vmatpush1.bf16.msra.mxu0 %v370
    %397 = vmatprep.subr.bf16.mxu0 0
    %398 = vmatpush1.bf16.msra.mxu0 %v369
    %399 = vmatprep.subr.bf16.mxu0 0
    %400 = vmatpush1.bf16.msra.mxu0 %v368
    %401 = vmatprep.subr.bf16.mxu0 0
    %402 = vmatpush1.bf16.msra.mxu0 %v367
    %403 = vmatprep.subr.bf16.mxu0 0
    %404 = vmatpush1.bf16.msra.mxu0 %v366
    %405 = vmatprep.subr.bf16.mxu0 0
    %406 = vmatpush1.bf16.msra.mxu0 %v365
    %407 = vmatprep.subr.bf16.mxu0 0
    %408 = vmatpush1.bf16.msra.mxu0 %v364
    %409 = vmatprep.subr.bf16.mxu0 0
    %410 = vmatpush1.bf16.msra.mxu0 %v363
    %411 = vmatprep.subr.bf16.mxu0 0
    %412 = vmatpush2.bf16.msra.mxu0 %v378
    %413 = vmatprep.subr.bf16.mxu0 0
    %414 = vmatpush2.bf16.msra.mxu0 %v377
    %415 = vmatprep.subr.bf16.mxu0 0
    %416 = vmatpush2.bf16.msra.mxu0 %v376
    %417 = vmatprep.subr.bf16.mxu0 0
    %418 = vmatpush2.bf16.msra.mxu0 %v375
    %419 = vmatprep.subr.bf16.mxu0 0
    %420 = vmatpush2.bf16.msra.mxu0 %v374
    %421 = vmatprep.subr.bf16.mxu0 0
    %422 = vmatpush2.bf16.msra.mxu0 %v373
    %423 = vmatprep.subr.bf16.mxu0 0
    %424 = vmatpush2.bf16.msra.mxu0 %v372
    %425 = vmatprep.subr.bf16.mxu0 0
    %426 = vmatpush2.bf16.msra.mxu0 %v371
    %427 = vmatprep.mubr.bf16.mxu0 %v259
    %428 = vmatmul.mubr.bf16.gmra.mxu0 %v258
    %v429 = vpop.f32.mrf.mxu0
    %v430 = vadd.f32 %v297, %v429
    %v431 = vpop.f32.mrf.mxu0
    %v432 = vpop.f32.mrf.mxu0
    %v433 = vadd.f32 %v297, %v432
    %v434 = vpop.f32.mrf.mxu0
    %435 = vdwg.mxu0
    %v436 = vunpack.c.l.bf16 %v63
    %v437 = vunpack.c.l.bf16 %v64
    %v438 = vadd.f32 %v430, %v436
    %v439 = vadd.f32 %v433, %v437
    %440 = vst [vmem:[#allocation8] sm:$0xff] %v438
    %441 = vst [vmem:[#allocation8 + $0x8] sm:$0xff] %v439
    // Predicated region
    $region34: #{tpu_custom_call.1} parent=1 // pred_check
      _
    $region35: #{tpu_custom_call.1} parent=1 // pred_check_branch
      %443 = sbr.rel (0) target = $region37
    $region36: #{tpu_custom_call.1} parent=1 // pred_region
      %s445 = ssub.s32 256, 256
      %446 = vsyncadd [#allocation4], %s445
      %s447 = sshll.u32 [#allocation8], 4
      %s448 = int_to_ptr.vmem [resolvable:$true] %s447
      %453 = dma.vmem_to_hbm [thread:$0]  %s448, 256, %s5, [#allocation4], 128, 128, 8
    $region37: #{tpu_custom_call.1} parent=1 // pred_fallthru
      _
    // Predicated region
    $region38: #{tpu_custom_call.1} parent=1 // pred_check
      _
    $region39: #{tpu_custom_call.1} parent=1 // pred_check_branch
      %455 = sbr.rel (0) target = $region41
    $region40: #{tpu_custom_call.1} parent=1 // pred_region
      %456 = dma.done [#allocation4], 256
    $region41: #{tpu_custom_call.1} parent=1 // pred_fallthru
      _
    %457 = vsyncpa [#allocation3], 1
    %458 = vsyncpa [#allocation6], 1
    %459 = vsyncpa [#allocation4], 1

</llo_original>
